<compile_context>
chip_gen: v7x
topology: tpu7x:2x2x1
jax: 0.10.0
libtpu: 0.0.40
codegen_flags: <defaults>
</compile_context>

<pallas_src>
import jax
import jax.numpy as jnp
from jax.experimental import pallas as pl
from jax.experimental.pallas import tpu as pltpu


# ------------------------------ kernel body --------------------------------
def _scaling_kernel(x_ref, low_ref, inv_ref, o_ref):
    # (x - low) * inv_rng, broadcasting (1, td) params over (tb, td) rows.
    cdt = low_ref.dtype
    y = (x_ref[...].astype(cdt) - low_ref[...]) * inv_ref[...]
    o_ref[...] = y.astype(o_ref.dtype)


# ------------------------------ tile picking --------------------------------
_TARGET_BLOCK_BYTES = 4 * 1024 * 1024   # ~4 MiB per input block
_MAX_BLOCK_BYTES = 6 * 1024 * 1024      # 2 in + 2 out double-buffers <= 24 MiB
_VMEM_LIMIT_BYTES = 32 * 1024 * 1024    # explicit scoped-VMEM (safe v5e..v7x)


def _sublane_align(itemsize):
    # Native sublane tile: 8 rows for 4-byte, 16 for 2-byte, 32 for 1-byte.
    return max(8, 32 // max(1, int(itemsize)))


def _pick_tiles(b_rows, d, itemsize, block_rows=None):
    """Choose (tb, td) batch/feature tiles.

    tb is a multiple of the dtype's sublane tile (unless it covers all rows);
    td is a multiple of 128 (or the full feature extent). The block is capped
    so double-buffered in+out stays inside the VMEM budget.
    """
    align = _sublane_align(itemsize)

    # Feature tile: only split d when even a minimal (align, d) block would be
    # too large AND d splits cleanly into 128-lane chunks.
    td = d
    if align * d * itemsize > _MAX_BLOCK_BYTES and d % 128 == 0 and d > 128:
        td = max(128, ((_MAX_BLOCK_BYTES // (align * itemsize)) // 128) * 128)
        td = min(td, d)

    # Batch tile.
    if block_rows is not None:
        tb = max(1, min(int(block_rows), b_rows))
    else:
        tb = min(b_rows, max(align, _TARGET_BLOCK_BYTES // max(1, td * itemsize)))
    if tb < b_rows:
        tb = max(align, (tb // align) * align)
    # Final cap against the VMEM budget.
    while tb > align and tb * td * itemsize > _MAX_BLOCK_BYTES:
        tb = max(align, ((tb // 2) // align) * align)
    return tb, td


# ------------------------------ pallas_call ---------------------------------
def _scaling_call(x_work, low2, inv2, out_dtype, block_rows=None, donate_x=False):
    b_rows, d_work = x_work.shape
    tb, td = _pick_tiles(b_rows, d_work, x_work.dtype.itemsize, block_rows)
    grid = (pl.cdiv(b_rows, tb), pl.cdiv(d_work, td))

    return pl.pallas_call(
        _scaling_kernel,
        out_shape=jax.ShapeDtypeStruct((b_rows, d_work), out_dtype),
        grid_spec=pl.GridSpec(
            grid=grid,
            in_specs=[
                pl.BlockSpec((tb, td), lambda i, j: (i, j)),   # x tile
                pl.BlockSpec((1, td), lambda i, j: (0, j)),    # low
                pl.BlockSpec((1, td), lambda i, j: (0, j)),    # inv_rng
            ],
            out_specs=pl.BlockSpec((tb, td), lambda i, j: (i, j)),
        ),
        compiler_params=pltpu.CompilerParams(
            # On v7x, pltpu.CORE_PARALLEL on the batch axis engages both TCs.
            dimension_semantics=("parallel", "parallel"),
            vmem_limit_bytes=_VMEM_LIMIT_BYTES,
        ),
        input_output_aliases=({0: 0} if donate_x else {}),
    )(x_work, low2, inv2)


# ------------------------------ module wrapper ------------------------------
class ScalingExtractorPallas:
    """Pallas analogue of leap_c ScalingExtractor.

    Bounds preprocessing is done ONCE at construction; per-forward is a single
    pallas_call with no host-side pads/slices.
    """

    def __init__(self, low, high, compute_dtype=jnp.float32):
        low32 = jnp.asarray(low, jnp.float32).reshape(-1)
        high32 = jnp.asarray(high, jnp.float32).reshape(-1)
        if low32.shape != high32.shape:
            raise ValueError("low/high must share the same 1D shape")
        d = int(low32.shape[0])

        rng = high32 - low32
        bad = (rng == 0) | ~jnp.isfinite(rng)
        inv = 1.0 / jnp.where(bad, 1.0, rng)          # bad features -> *1
        low_k = jnp.where(jnp.isfinite(low32), low32, 0.0)

        cdt = compute_dtype
        self.obs_dim = d
        self._low = low_k.astype(cdt).reshape(1, d)
        self._inv = inv.astype(cdt).reshape(1, d)

        # Lane-dense packing factor ((b, d) -> (b/reps, 128)); params tiled
        # once here so the forward path does no per-call jnp.tile.
        self._reps = (128 // d) if (d < 128 and 128 % d == 0) else 0
        if self._reps:
            self._low_ld = jnp.tile(low_k, self._reps).astype(cdt).reshape(1, 128)
            self._inv_ld = jnp.tile(inv, self._reps).astype(cdt).reshape(1, 128)

    @property
    def output_size(self):
        return self.obs_dim

    def __call__(self, x, *, block_rows=None, donate_x=False):
        b, d = x.shape
        if d != self.obs_dim:
            raise ValueError(f"expected obs_dim={self.obs_dim}, got {d}")
        out_dtype = x.dtype
        reps = self._reps
        if reps and b % reps == 0:
            # Free row-major bitcast to a lane-dense (b/reps, 128) layout.
            x_work = x.reshape(b // reps, 128)
            out = _scaling_call(x_work, self._low_ld, self._inv_ld, out_dtype,
                                block_rows=block_rows, donate_x=donate_x)
            return out.reshape(b, d)
        return _scaling_call(x, self._low, self._inv, out_dtype,
                             block_rows=block_rows, donate_x=donate_x)


def scaling_extractor_forward(x, low, high, *, block_rows=None):
    """One-shot functional form. Re-does bounds preprocessing every call;
    prefer ScalingExtractorPallas for repeated use (training loops)."""
    return ScalingExtractorPallas(low, high)(x, block_rows=block_rows)


# ---------------------------------- demo ------------------------------------
if __name__ == "__main__":
    key = jax.random.PRNGKey(0)
    k1, k2, k3 = jax.random.split(key, 3)

    # Case 1: module-sized demo, lane-dense path (d=32 < 128, batch % 4 == 0).
    batch, obs_dim = 8, 32
    idx = jnp.arange(obs_dim, dtype=jnp.float32)
    low = -(idx + 1.0)
    high = (idx + 1.0)
    extractor = ScalingExtractorPallas(low, high)
    x = jax.random.uniform(k1, (batch, obs_dim), dtype=jnp.float32,
                           minval=-1.0, maxval=1.0) * (idx + 1.0)
    out = jax.block_until_ready(extractor(x))
    ref = (x - low[None, :]) / (high - low)[None, :]
    assert out.shape == (batch, obs_dim)
    assert jnp.allclose(out, ref, atol=1e-5, rtol=1e-5), "case1 mismatch"

    # Case 2: batch not divisible by the packing factor -> plain-layout path
    # (no padding, no slicing; full-extent feature block).
    batch2 = 7
    x2 = jax.random.normal(k2, (batch2, obs_dim), dtype=jnp.float32) * (idx + 1.0)
    out2 = jax.block_until_ready(extractor(x2))
    ref2 = (x2 - low[None, :]) / (high - low)[None, :]
    assert out2.shape == (batch2, obs_dim)
    assert jnp.allclose(out2, ref2, atol=1e-5, rtol=1e-5), "case2 mismatch"

    # Case 3: wide features + ragged last batch block (40 rows, tb=16 -> 16+16+8),
    # exercising Pallas' implicit masking instead of host-side pad/slice.
    batch3, obs_dim3 = 40, 256
    idx3 = jnp.arange(obs_dim3, dtype=jnp.float32)
    low3 = -(idx3 + 2.0)
    high3 = 2.0 * (idx3 + 2.0)
    x3 = jax.random.normal(k3, (batch3, obs_dim3), dtype=jnp.float32) * (idx3 + 2.0)
    out3 = jax.block_until_ready(
        scaling_extractor_forward(x3, low3, high3, block_rows=16))
    ref3 = (x3 - low3[None, :]) / (high3 - low3)[None, :]
    assert out3.shape == (batch3, obs_dim3)
    assert jnp.allclose(out3, ref3, atol=1e-5, rtol=1e-5), "case3 mismatch"

    print("KERNEL_OK")
</pallas_src>

<mosaic_0001>
module attributes {stable_mosaic.version = 11 : i64} {
  func.func @_scaling_kernel(%arg0: i32, %arg1: i32, %arg2: memref<2x128xf32, #tpu.memory_space<vmem>>, %arg3: memref<1x128xf32, #tpu.memory_space<vmem>>, %arg4: memref<1x128xf32, #tpu.memory_space<vmem>>, %arg5: memref<2x128xf32, #tpu.memory_space<vmem>>) attributes {dimension_semantics = [#tpu.dimension_semantics<parallel>, #tpu.dimension_semantics<parallel>], iteration_bounds = array<i64: 1, 1>, scalar_prefetch = 0 : i64, scratch_operands = 0 : i64, tpu.core_type = #tpu.core_type<tc>, window_params = [{transform_indices = @transform_0, window_bounds = array<i64: 2, 128>}, {transform_indices = @transform_1, window_bounds = array<i64: 1, 128>}, {transform_indices = @transform_2, window_bounds = array<i64: 1, 128>}, {transform_indices = @transform_3, window_bounds = array<i64: 2, 128>}]} {
    %c0 = arith.constant 0 : index
    %c0_0 = arith.constant 0 : index
    %0 = vector.load %arg2[%c0, %c0_0] : memref<2x128xf32, #tpu.memory_space<vmem>>, vector<2x128xf32>
    %c0_1 = arith.constant 0 : index
    %c0_2 = arith.constant 0 : index
    %1 = vector.load %arg3[%c0_1, %c0_2] : memref<1x128xf32, #tpu.memory_space<vmem>>, vector<1x128xf32>
    %2 = vector.broadcast %1 : vector<1x128xf32> to vector<2x128xf32>
    %3 = arith.subf %0, %2 : vector<2x128xf32>
    %c0_3 = arith.constant 0 : index
    %c0_4 = arith.constant 0 : index
    %4 = vector.load %arg4[%c0_3, %c0_4] : memref<1x128xf32, #tpu.memory_space<vmem>>, vector<1x128xf32>
    %5 = vector.broadcast %4 : vector<1x128xf32> to vector<2x128xf32>
    %6 = arith.mulf %3, %5 : vector<2x128xf32>
    %c0_5 = arith.constant 0 : index
    %c0_6 = arith.constant 0 : index
    %7 = vector.load %arg5[%c0_5, %c0_6] : memref<2x128xf32, #tpu.memory_space<vmem>>, vector<2x128xf32>
    tpu.vector_store %arg5[%c0_5, %c0_6], %6 {strides = array<i32>} : memref<2x128xf32, #tpu.memory_space<vmem>>, vector<2x128xf32>,
    return
  }
  func.func @transform_0(%arg0: i32, %arg1: i32) -> (i32, i32) {
    %c0_i32 = arith.constant 0 : i32
    return %arg0, %arg1 : i32, i32
  }
  func.func @transform_1(%arg0: i32, %arg1: i32) -> (i32, i32) {
    %c0_i32 = arith.constant 0 : i32
    %c0_i32_0 = arith.constant 0 : i32
    return %c0_i32, %arg1 : i32, i32
  }
  func.func @transform_2(%arg0: i32, %arg1: i32) -> (i32, i32) {
    %c0_i32 = arith.constant 0 : i32
    %c0_i32_0 = arith.constant 0 : i32
    return %c0_i32, %arg1 : i32, i32
  }
  func.func @transform_3(%arg0: i32, %arg1: i32) -> (i32, i32) {
    %c0_i32 = arith.constant 0 : i32
    return %arg0, %arg1 : i32, i32
  }
}

</mosaic_0001>

<llo_original>
// kernel: tpu_custom_call.1
$region0: #{tpu_custom_call.1}
  #allocation0 [shape = 'u32[]', space=smem, size = 0x4, offset = 0x4, fixed_abs, tag = 'smem constant byte address 0x4 - core index']
  #allocation1 [shape = 'u32[144,128]{1,0:T(1,128)}', space=vmem, size = 0x12000, scoped, tag = 'internal scratch']
  %s0 = inlined_call_operand.hbm [shape: f32[2,128], index: 0, kind: input, shape index: {}]
  %s1 = inlined_call_operand.vmem [shape: f32[1,128], index: 1, kind: input, shape index: {}]
  %s2 = inlined_call_operand.vmem [shape: f32[1,128], index: 2, kind: input, shape index: {}]
  %s3 = inlined_call_operand.hbm [shape: f32[2,128], index: 3, kind: output, shape index: {}]
  %s4 = sld [smem:[#allocation0]]
  $region26: #{tpu_custom_call.1} parent=0
    _
  %s6 = ssub.s32 1, %s4
  %s7 = scalar_select 0, %s6, %s4
  $region1: #{tpu_custom_call.1} parent=0
    #allocation2 [shape = 'u8[1024]{0}', space=vmem, size = 0x400, scoped, tag = 'input window, operand 0, single buffered']
    #allocation3 [shape = 's32[1]{0}', space=sflag, size = 0x4, scoped, tag = 'scoped memory for tpu_custom_call.1']
    #allocation4 [shape = 's32[1]{0}', space=sflag, size = 0x4, scoped, tag = 'scoped memory for tpu_custom_call.1']
    #allocation5 [shape = 'u8[1024]{0}', space=vmem, size = 0x400, scoped, tag = 'output window, operand 0, single buffered']
    %8 = vsyncpa [#allocation3], 0
    %9 = vsyncpa [#allocation4], 0
    // Predicated region
    $region2: #{tpu_custom_call.1} parent=1 // pred_check
      _
    $region3: #{tpu_custom_call.1} parent=1 // pred_check_branch
      %11 = sbr.rel (0) target = $region5
    $region4: #{tpu_custom_call.1} parent=1 // pred_region
      %s13 = ssub.s32 32, 32
      %14 = vsyncadd [#allocation3], %s13
      %s16 = sshll.u32 [#allocation2], 4
      %s17 = int_to_ptr.vmem [resolvable:$true] %s16
      %19 = dma.hbm_to_vmem [thread:$0]  %s0, 32, %s17, [#allocation3]
    $region5: #{tpu_custom_call.1} parent=1 // pred_fallthru
      _
    // Predicated region
    $region6: #{tpu_custom_call.1} parent=1 // pred_check
      _
    $region7: #{tpu_custom_call.1} parent=1 // pred_check_branch
      %21 = sbr.rel (0) target = $region9
    $region8: #{tpu_custom_call.1} parent=1 // pred_region
      _
    $region9: #{tpu_custom_call.1} parent=1 // pred_fallthru
      _
    // Predicated region
    $region10: #{tpu_custom_call.1} parent=1 // pred_check
      _
    $region11: #{tpu_custom_call.1} parent=1 // pred_check_branch
      %23 = sbr.rel (0) target = $region13
    $region12: #{tpu_custom_call.1} parent=1 // pred_region
      _
    $region13: #{tpu_custom_call.1} parent=1 // pred_fallthru
      _
    // Predicated region
    $region14: #{tpu_custom_call.1} parent=1 // pred_check
      _
    $region15: #{tpu_custom_call.1} parent=1 // pred_check_branch
      %25 = sbr.rel (0) target = $region17
    $region16: #{tpu_custom_call.1} parent=1 // pred_region
      %26 = dma.done [#allocation3], 32
    $region17: #{tpu_custom_call.1} parent=1 // pred_fallthru
      _
    %v27 = vld [vmem:[#allocation2] sm:$0x3]
    %v28 = vld [vmem:[%s1] sm:$0x1]
    %v30 = vlaneseq
    %v31 = vshrl.u32 %v30, 7
    %v32 = vsub.s32 0, %v31
    %v33 = vrot.slane %v28, %v32
    %v35 = vsub.f32 %v27, %v33
    %v36 = vld [vmem:[%s2] sm:$0x1]
    %v38 = vlaneseq
    %v39 = vshrl.u32 %v38, 7
    %v40 = vsub.s32 0, %v39
    %v41 = vrot.slane %v36, %v40
    %v43 = vmul.f32 %v35, %v41
    %44 = vst [vmem:[#allocation5] sm:$0x3] %v43
    // Predicated region
    $region18: #{tpu_custom_call.1} parent=1 // pred_check
      _
    $region19: #{tpu_custom_call.1} parent=1 // pred_check_branch
      %46 = sbr.rel (0) target = $region21
    $region20: #{tpu_custom_call.1} parent=1 // pred_region
      %s48 = ssub.s32 32, 32
      %49 = vsyncadd [#allocation4], %s48
      %s51 = sshll.u32 [#allocation5], 4
      %s52 = int_to_ptr.vmem [resolvable:$true] %s51
      %54 = dma.vmem_to_hbm [thread:$0]  %s52, 32, %s3, [#allocation4]
    $region21: #{tpu_custom_call.1} parent=1 // pred_fallthru
      _
    // Predicated region
    $region22: #{tpu_custom_call.1} parent=1 // pred_check
      _
    $region23: #{tpu_custom_call.1} parent=1 // pred_check_branch
      %56 = sbr.rel (0) target = $region25
    $region24: #{tpu_custom_call.1} parent=1 // pred_region
      %57 = dma.done [#allocation4], 32
    $region25: #{tpu_custom_call.1} parent=1 // pred_fallthru
      _
    %58 = vsyncpa [#allocation3], 1
    %59 = vsyncpa [#allocation4], 1

</llo_original>
